<compile_context>
chip_gen: v7x
topology: tpu7x:2x2x1
jax: 0.10.0
libtpu: 0.0.40
codegen_flags: <defaults>
</compile_context>

<pallas_src>
import math

import jax
import jax.numpy as jnp
from jax import lax
from jax.experimental import pallas as pl
from jax.experimental.pallas import tpu as pltpu

NEG_SLOPE = 0.01  # torch.nn.LeakyReLU default


def _leaky_relu(x):
    # max(x, 0.01*x): fewer VALU slots than cmp+mul+select.
    return jnp.maximum(x, NEG_SLOPE * x)


def _make_resblock_kernel(WCi, WCo, has_skip):
    """Kernel over an (Mc, W*C) slab; Mc = (#images in this grid step) * H."""

    def _stacked_taps(a, mu, md):
        # LHS for a 3x3 SAME conv as one matmul: [a(h-1) | a(h) | a(h+1)] along
        # lanes.  mu/md are (Mc, 1) 0/1 masks zeroing rows whose h-1 / h+1
        # neighbour belongs to another image (or lies outside the image).
        z = jnp.zeros_like(a[:1])
        up = jnp.concatenate([z, a[:-1]], axis=0) * mu
        dn = jnp.concatenate([a[1:], z], axis=0) * md
        return jnp.concatenate([up, a, dn], axis=1)

    if has_skip:
        def kernel(x_ref, mu_ref, md_ref, w1_ref, b1_ref, w2_ref, b2_ref,
                   ws_ref, bs_ref, o_ref):
            x = x_ref[...]                      # (Mc, WCi)
            mu = mu_ref[...]                    # (Mc, 1)
            md = md_ref[...]                    # (Mc, 1)
            h1 = jnp.dot(_stacked_taps(x, mu, md), w1_ref[...],
                         preferred_element_type=jnp.float32) + b1_ref[...]
            h1 = _leaky_relu(h1)                # (Mc, WCo)
            h2 = jnp.dot(_stacked_taps(h1, mu, md), w2_ref[...],
                         preferred_element_type=jnp.float32) + b2_ref[...]
            h2 = _leaky_relu(h2)                # (Mc, WCo)
            skip = jnp.dot(x, ws_ref[...],
                           preferred_element_type=jnp.float32) + bs_ref[...]
            o_ref[...] = (h2 + skip).astype(o_ref.dtype)
    else:
        def kernel(x_ref, mu_ref, md_ref, w1_ref, b1_ref, w2_ref, b2_ref,
                   o_ref):
            x = x_ref[...]                      # (Mc, WCi) == (Mc, WCo)
            mu = mu_ref[...]
            md = md_ref[...]
            h1 = jnp.dot(_stacked_taps(x, mu, md), w1_ref[...],
                         preferred_element_type=jnp.float32) + b1_ref[...]
            h1 = _leaky_relu(h1)
            h2 = jnp.dot(_stacked_taps(h1, mu, md), w2_ref[...],
                         preferred_element_type=jnp.float32) + b2_ref[...]
            h2 = _leaky_relu(h2)
            o_ref[...] = (h2 + x).astype(o_ref.dtype)   # identity skip, no matmul

    return kernel


def _band_3x3_stacked(w_hwio, W):
    """(3,3,Ci,Co) HWIO filter -> (3*W*Ci, W*Co) K-stacked banded matrix.

    Row block ky has entry [src*Ci + ci, w*Co + co] = w[ky, dx, ci, co] with
    src = w + dx - 1; out-of-range src dropped == SAME zero padding along width.
    """
    kh, kw, Ci, Co = w_hwio.shape
    bands = []
    for ky in range(kh):
        m = jnp.zeros((W * Ci, W * Co), jnp.float32)
        for dx in range(kw):
            shift = jnp.eye(W, k=1 - dx, dtype=jnp.float32)      # [src, w]
            m = m + jnp.kron(shift, w_hwio[ky, dx].astype(jnp.float32))
        bands.append(m)
    return jnp.concatenate(bands, axis=0)


def _pad_in_channels(Cin, W, lane=128):
    """Smallest Cin' >= Cin such that W*Cin' is a multiple of `lane`."""
    step = lane // math.gcd(W, lane)
    return ((Cin + step - 1) // step) * step


def _default_batch_chunks(N):
    # Two "parallel" grid steps only where there are 2 TensorCores per chip
    # (v7x); on single-TC parts (v5e/v6e) a grid is a serial loop -> one step.
    try:
        kind = jax.devices()[0].device_kind.lower()
    except Exception:
        return 1
    if N % 2 == 0 and ("v7" in kind or "7x" in kind):
        return 2
    return 1


def residual_block_pallas(x_nchw, params, *, batch_chunks=None):
    """x_nchw: (N, Cin, H, W) float32. params: dict of HWIO weights / biases."""
    w1, b1, w2, b2 = params["w1"], params["b1"], params["w2"], params["b2"]
    has_skip = "ws" in params

    N, Cin, H, W = x_nchw.shape
    Cout = w1.shape[-1]
    if not has_skip:
        assert Cin == Cout, "identity skip requires in_ch == out_ch"

    G = _default_batch_chunks(N) if batch_chunks is None else batch_chunks
    if N % G != 0:
        G = 1
    M = N * H
    Mc = (N // G) * H

    # ---- lane-dense input slab (N*H, W*Cin'); channel zero-padding is exact ----
    x_nhwc = jnp.transpose(x_nchw, (0, 2, 3, 1)).astype(jnp.float32)
    if has_skip:
        Cin_p = _pad_in_channels(Cin, W)
        if Cin_p > 2 * Cin:            # don't blow up tiny-W configs
            Cin_p = Cin
    else:
        Cin_p = Cin                    # identity path adds x directly to h2
    if Cin_p != Cin:
        x_nhwc = jnp.pad(x_nhwc, ((0, 0), (0, 0), (0, 0), (0, Cin_p - Cin)))
        w1 = jnp.pad(w1.astype(jnp.float32),
                     ((0, 0), (0, 0), (0, Cin_p - Cin), (0, 0)))
    WCi, WCo = W * Cin_p, W * Cout
    x2d = x_nhwc.reshape(M, WCi)

    # ---- K-stacked banded weights, width-tiled biases ----
    w1_stack = _band_3x3_stacked(w1, W)                          # (3*WCi, WCo)
    w2_stack = _band_3x3_stacked(w2, W)                          # (3*WCo, WCo)
    b1_t = jnp.tile(b1.astype(jnp.float32), W).reshape(1, WCo)
    b2_t = jnp.tile(b2.astype(jnp.float32), W).reshape(1, WCo)

    # ---- image-boundary row masks (identical for every grid chunk) ----
    h_idx = jnp.arange(Mc, dtype=jnp.int32) % H
    mask_up = (h_idx != 0).astype(jnp.float32).reshape(Mc, 1)
    mask_dn = (h_idx != H - 1).astype(jnp.float32).reshape(Mc, 1)

    kernel = _make_resblock_kernel(WCi, WCo, has_skip)

    inv = lambda shape: pl.BlockSpec(shape, lambda b: (0,) * len(shape))
    in_specs = [
        pl.BlockSpec((Mc, WCi), lambda b: (b, 0)),   # x slab chunk
        inv((Mc, 1)),                                # mask_up
        inv((Mc, 1)),                                # mask_dn
        inv((3 * WCi, WCo)),                         # K-stacked conv1 band
        inv((1, WCo)),                               # b1
        inv((3 * WCo, WCo)),                         # K-stacked conv2 band
        inv((1, WCo)),                               # b2
    ]
    operands = [x2d, mask_up, mask_dn, w1_stack, b1_t, w2_stack, b2_t]

    flops = 2 * M * (3 * WCi * WCo + 3 * WCo * WCo)
    bytes_accessed = 4 * (M * WCi + M * WCo + 3 * WCi * WCo + 3 * WCo * WCo
                          + 2 * WCo + 2 * Mc)
    if has_skip:
        ws = jnp.pad(params["ws"].astype(jnp.float32),
                     ((0, Cin_p - Cin), (0, 0)))
        ws_band = jnp.kron(jnp.eye(W, dtype=jnp.float32), ws)   # (WCi, WCo)
        bs_t = jnp.tile(params["bs"].astype(jnp.float32), W).reshape(1, WCo)
        in_specs += [inv((WCi, WCo)), inv((1, WCo))]
        operands += [ws_band, bs_t]
        flops += 2 * M * WCi * WCo
        bytes_accessed += 4 * (WCi * WCo + WCo)

    out2d = pl.pallas_call(
        kernel,
        out_shape=jax.ShapeDtypeStruct((M, WCo), jnp.float32),
        grid_spec=pltpu.PrefetchScalarGridSpec(
            num_scalar_prefetch=0,
            grid=(G,),
            in_specs=in_specs,
            out_specs=pl.BlockSpec((Mc, WCo), lambda b: (b, 0)),
        ),
        compiler_params=pltpu.CompilerParams(
            dimension_semantics=("parallel",)),
        cost_estimate=pl.CostEstimate(flops=flops, transcendentals=0,
                                      bytes_accessed=bytes_accessed),
    )(*operands)

    # TODO(synk): when chaining ResidualBlocks, keep activations in the (N*H, W*C)
    # slab layout between blocks and transpose only at the model boundary.
    out_nhwc = out2d.reshape(N, H, W, Cout)
    return jnp.transpose(out_nhwc, (0, 3, 1, 2))


def residual_block_ref(x_nchw, params):
    """Pure-JAX reference (NHWC convs) for correctness checking."""
    has_skip = "ws" in params
    x = jnp.transpose(x_nchw, (0, 2, 3, 1))
    dn = lax.conv_dimension_numbers(x.shape, params["w1"].shape,
                                    ("NHWC", "HWIO", "NHWC"))
    out = lax.conv_general_dilated(x, params["w1"], (1, 1), "SAME",
                                   dimension_numbers=dn) + params["b1"]
    out = jnp.where(out >= 0, out, NEG_SLOPE * out)
    dn2 = lax.conv_dimension_numbers(out.shape, params["w2"].shape,
                                     ("NHWC", "HWIO", "NHWC"))
    out = lax.conv_general_dilated(out, params["w2"], (1, 1), "SAME",
                                   dimension_numbers=dn2) + params["b2"]
    out = jnp.where(out >= 0, out, NEG_SLOPE * out)
    if has_skip:
        identity = jnp.einsum("nhwc,cd->nhwd", x, params["ws"]) + params["bs"]
    else:
        identity = x
    return jnp.transpose(out + identity, (0, 3, 1, 2))


def init_params(key, in_ch, out_ch):
    ks = jax.random.split(key, 6)
    params = {
        # HWIO layout (a PyTorch OIHW weight would be transposed (2,3,1,0))
        "w1": jax.random.normal(ks[0], (3, 3, in_ch, out_ch), jnp.float32) * 0.1,
        "b1": jax.random.normal(ks[1], (out_ch,), jnp.float32) * 0.1,
        "w2": jax.random.normal(ks[2], (3, 3, out_ch, out_ch), jnp.float32) * 0.1,
        "b2": jax.random.normal(ks[3], (out_ch,), jnp.float32) * 0.1,
    }
    if in_ch != out_ch:
        params["ws"] = jax.random.normal(ks[4], (in_ch, out_ch), jnp.float32) * 0.1
        params["bs"] = jax.random.normal(ks[5], (out_ch,), jnp.float32) * 0.1
    return params


if __name__ == "__main__":
    key = jax.random.PRNGKey(0)
    k_x1, k_p1, k_x2, k_p2 = jax.random.split(key, 4)

    N, H, W = 2, 16, 16

    # Config 1: in_ch != out_ch -> exercises the 1x1 skip conv (+ Cin padding).
    Cin, Cout = 4, 8
    x = jax.random.normal(k_x1, (N, Cin, H, W), jnp.float32)
    params = init_params(k_p1, Cin, Cout)
    out = jax.block_until_ready(residual_block_pallas(x, params))
    ref = residual_block_ref(x, params)
    assert out.shape == (N, Cout, H, W)
    assert jnp.allclose(out, ref, atol=1e-4, rtol=1e-4), "mismatch (skip path)"

    # Config 2: in_ch == out_ch -> identity skip (no skip matmul).
    Cin2 = Cout2 = 8
    x2 = jax.random.normal(k_x2, (N, Cin2, H, W), jnp.float32)
    params2 = init_params(k_p2, Cin2, Cout2)
    out2 = jax.block_until_ready(residual_block_pallas(x2, params2))
    ref2 = residual_block_ref(x2, params2)
    assert out2.shape == (N, Cout2, H, W)
    assert jnp.allclose(out2, ref2, atol=1e-4, rtol=1e-4), "mismatch (identity path)"

    print("KERNEL_OK")
</pallas_src>

<mosaic_0001>
module attributes {stable_mosaic.version = 11 : i64} {
  func.func @kernel(%arg0: i32, %arg1: memref<32x128xf32, #tpu.memory_space<vmem>>, %arg2: memref<32x1xf32, #tpu.memory_space<vmem>>, %arg3: memref<32x1xf32, #tpu.memory_space<vmem>>, %arg4: memref<384x128xf32, #tpu.memory_space<vmem>>, %arg5: memref<1x128xf32, #tpu.memory_space<vmem>>, %arg6: memref<384x128xf32, #tpu.memory_space<vmem>>, %arg7: memref<1x128xf32, #tpu.memory_space<vmem>>, %arg8: memref<128x128xf32, #tpu.memory_space<vmem>>, %arg9: memref<1x128xf32, #tpu.memory_space<vmem>>, %arg10: memref<32x128xf32, #tpu.memory_space<vmem>>) attributes {dimension_semantics = [#tpu.dimension_semantics<parallel>], iteration_bounds = array<i64: 1>, scalar_prefetch = 0 : i64, scratch_operands = 0 : i64, tpu.core_type = #tpu.core_type<tc>, window_params = [{transform_indices = @transform_0, window_bounds = array<i64: 32, 128>}, {pipeline_mode = #tpu.pipeline_mode<synchronous>, transform_indices = @transform_1, window_bounds = array<i64: 32, 1>}, {pipeline_mode = #tpu.pipeline_mode<synchronous>, transform_indices = @transform_2, window_bounds = array<i64: 32, 1>}, {pipeline_mode = #tpu.pipeline_mode<synchronous>, transform_indices = @transform_3, window_bounds = array<i64: 384, 128>}, {pipeline_mode = #tpu.pipeline_mode<synchronous>, transform_indices = @transform_4, window_bounds = array<i64: 1, 128>}, {pipeline_mode = #tpu.pipeline_mode<synchronous>, transform_indices = @transform_5, window_bounds = array<i64: 384, 128>}, {pipeline_mode = #tpu.pipeline_mode<synchronous>, transform_indices = @transform_6, window_bounds = array<i64: 1, 128>}, {pipeline_mode = #tpu.pipeline_mode<synchronous>, transform_indices = @transform_7, window_bounds = array<i64: 128, 128>}, {pipeline_mode = #tpu.pipeline_mode<synchronous>, transform_indices = @transform_8, window_bounds = array<i64: 1, 128>}, {transform_indices = @transform_9, window_bounds = array<i64: 32, 128>}]} {
    %c0 = arith.constant 0 : index
    %c0_0 = arith.constant 0 : index
    %0 = vector.load %arg1[%c0, %c0_0] : memref<32x128xf32, #tpu.memory_space<vmem>>, vector<32x128xf32>
    %c0_1 = arith.constant 0 : index
    %c0_2 = arith.constant 0 : index
    %1 = vector.load %arg2[%c0_1, %c0_2] : memref<32x1xf32, #tpu.memory_space<vmem>>, vector<32x1xf32>
    %c0_3 = arith.constant 0 : index
    %c0_4 = arith.constant 0 : index
    %2 = vector.load %arg3[%c0_3, %c0_4] : memref<32x1xf32, #tpu.memory_space<vmem>>, vector<32x1xf32>
    %cst = arith.constant 0.000000e+00 : f32
    %3 = vector.broadcast %cst : f32 to vector<1x128xf32>
    %4 = vector.extract_strided_slice %0 {offsets = [0, 0], sizes = [31, 128], strides = [1, 1]} : vector<32x128xf32> to vector<31x128xf32>
    %5 = tpu.concatenate %3, %4 in 0 : vector<1x128xf32>, vector<31x128xf32> -> vector<32x128xf32>
    %6 = vector.broadcast %1 : vector<32x1xf32> to vector<32x128xf32>
    %7 = arith.mulf %5, %6 : vector<32x128xf32>
    %8 = vector.extract_strided_slice %0 {offsets = [1, 0], sizes = [31, 128], strides = [1, 1]} : vector<32x128xf32> to vector<31x128xf32>
    %9 = tpu.concatenate %8, %3 in 0 : vector<31x128xf32>, vector<1x128xf32> -> vector<32x128xf32>
    %10 = vector.broadcast %2 : vector<32x1xf32> to vector<32x128xf32>
    %11 = arith.mulf %9, %10 : vector<32x128xf32>
    %12 = tpu.concatenate %7, %0, %11 in 1 : vector<32x128xf32>, vector<32x128xf32>, vector<32x128xf32> -> vector<32x384xf32>
    %c0_5 = arith.constant 0 : index
    %c0_6 = arith.constant 0 : index
    %13 = vector.load %arg4[%c0_5, %c0_6] : memref<384x128xf32, #tpu.memory_space<vmem>>, vector<384x128xf32>
    %cst_7 = arith.constant dense<0.000000e+00> : vector<32x128xf32>
    %14 = tpu.matmul %12, %13, %cst_7 {dimension_numbers = #tpu.dot_dimension_numbers<[1], [0], [0], [1], [0, 0, 1, 1], [], []>} : vector<32x384xf32>, vector<384x128xf32>, vector<32x128xf32> -> vector<32x128xf32>
    %c0_8 = arith.constant 0 : index
    %c0_9 = arith.constant 0 : index
    %15 = vector.load %arg5[%c0_8, %c0_9] : memref<1x128xf32, #tpu.memory_space<vmem>>, vector<1x128xf32>
    %16 = vector.broadcast %15 : vector<1x128xf32> to vector<32x128xf32>
    %17 = arith.addf %14, %16 : vector<32x128xf32>
    %cst_10 = arith.constant 0.00999999977 : f32
    %18 = vector.broadcast %cst_10 : f32 to vector<32x128xf32>
    %19 = arith.mulf %18, %17 : vector<32x128xf32>
    %20 = arith.maximumf %17, %19 : vector<32x128xf32>
    %cst_11 = arith.constant 0.000000e+00 : f32
    %21 = vector.broadcast %cst_11 : f32 to vector<1x128xf32>
    %22 = vector.extract_strided_slice %20 {offsets = [0, 0], sizes = [31, 128], strides = [1, 1]} : vector<32x128xf32> to vector<31x128xf32>
    %23 = tpu.concatenate %21, %22 in 0 : vector<1x128xf32>, vector<31x128xf32> -> vector<32x128xf32>
    %24 = vector.broadcast %1 : vector<32x1xf32> to vector<32x128xf32>
    %25 = arith.mulf %23, %24 : vector<32x128xf32>
    %26 = vector.extract_strided_slice %20 {offsets = [1, 0], sizes = [31, 128], strides = [1, 1]} : vector<32x128xf32> to vector<31x128xf32>
    %27 = tpu.concatenate %26, %21 in 0 : vector<31x128xf32>, vector<1x128xf32> -> vector<32x128xf32>
    %28 = vector.broadcast %2 : vector<32x1xf32> to vector<32x128xf32>
    %29 = arith.mulf %27, %28 : vector<32x128xf32>
    %30 = tpu.concatenate %25, %20, %29 in 1 : vector<32x128xf32>, vector<32x128xf32>, vector<32x128xf32> -> vector<32x384xf32>
    %c0_12 = arith.constant 0 : index
    %c0_13 = arith.constant 0 : index
    %31 = vector.load %arg6[%c0_12, %c0_13] : memref<384x128xf32, #tpu.memory_space<vmem>>, vector<384x128xf32>
    %cst_14 = arith.constant dense<0.000000e+00> : vector<32x128xf32>
    %32 = tpu.matmul %30, %31, %cst_14 {dimension_numbers = #tpu.dot_dimension_numbers<[1], [0], [0], [1], [0, 0, 1, 1], [], []>} : vector<32x384xf32>, vector<384x128xf32>, vector<32x128xf32> -> vector<32x128xf32>
    %c0_15 = arith.constant 0 : index
    %c0_16 = arith.constant 0 : index
    %33 = vector.load %arg7[%c0_15, %c0_16] : memref<1x128xf32, #tpu.memory_space<vmem>>, vector<1x128xf32>
    %34 = vector.broadcast %33 : vector<1x128xf32> to vector<32x128xf32>
    %35 = arith.addf %32, %34 : vector<32x128xf32>
    %cst_17 = arith.constant 0.00999999977 : f32
    %36 = vector.broadcast %cst_17 : f32 to vector<32x128xf32>
    %37 = arith.mulf %36, %35 : vector<32x128xf32>
    %38 = arith.maximumf %35, %37 : vector<32x128xf32>
    %c0_18 = arith.constant 0 : index
    %c0_19 = arith.constant 0 : index
    %39 = vector.load %arg8[%c0_18, %c0_19] : memref<128x128xf32, #tpu.memory_space<vmem>>, vector<128x128xf32>
    %cst_20 = arith.constant dense<0.000000e+00> : vector<32x128xf32>
    %40 = tpu.matmul %0, %39, %cst_20 {dimension_numbers = #tpu.dot_dimension_numbers<[1], [0], [0], [1], [0, 0, 1, 1], [], []>} : vector<32x128xf32>, vector<128x128xf32>, vector<32x128xf32> -> vector<32x128xf32>
    %c0_21 = arith.constant 0 : index
    %c0_22 = arith.constant 0 : index
    %41 = vector.load %arg9[%c0_21, %c0_22] : memref<1x128xf32, #tpu.memory_space<vmem>>, vector<1x128xf32>
    %42 = vector.broadcast %41 : vector<1x128xf32> to vector<32x128xf32>
    %43 = arith.addf %40, %42 : vector<32x128xf32>
    %44 = arith.addf %38, %43 : vector<32x128xf32>
    %c0_23 = arith.constant 0 : index
    %c0_24 = arith.constant 0 : index
    %45 = vector.load %arg10[%c0_23, %c0_24] : memref<32x128xf32, #tpu.memory_space<vmem>>, vector<32x128xf32>
    tpu.vector_store %arg10[%c0_23, %c0_24], %44 {strides = array<i32>} : memref<32x128xf32, #tpu.memory_space<vmem>>, vector<32x128xf32>,
    return
  }
  func.func @transform_0(%arg0: i32) -> (i32, i32) {
    %c0_i32 = arith.constant 0 : i32
    %c0_i32_0 = arith.constant 0 : i32
    return %arg0, %c0_i32 : i32, i32
  }
  func.func @transform_1(%arg0: i32) -> (i32, i32) {
    %c0_i32 = arith.constant 0 : i32
    %c0_i32_0 = arith.constant 0 : i32
    %c0_i32_1 = arith.constant 0 : i32
    return %c0_i32, %c0_i32_0 : i32, i32
  }
  func.func @transform_2(%arg0: i32) -> (i32, i32) {
    %c0_i32 = arith.constant 0 : i32
    %c0_i32_0 = arith.constant 0 : i32
    %c0_i32_1 = arith.constant 0 : i32
    return %c0_i32, %c0_i32_0 : i32, i32
  }
  func.func @transform_3(%arg0: i32) -> (i32, i32) {
    %c0_i32 = arith.constant 0 : i32
    %c0_i32_0 = arith.constant 0 : i32
    %c0_i32_1 = arith.constant 0 : i32
    return %c0_i32, %c0_i32_0 : i32, i32
  }
  func.func @transform_4(%arg0: i32) -> (i32, i32) {
    %c0_i32 = arith.constant 0 : i32
    %c0_i32_0 = arith.constant 0 : i32
    %c0_i32_1 = arith.constant 0 : i32
    return %c0_i32, %c0_i32_0 : i32, i32
  }
  func.func @transform_5(%arg0: i32) -> (i32, i32) {
    %c0_i32 = arith.constant 0 : i32
    %c0_i32_0 = arith.constant 0 : i32
    %c0_i32_1 = arith.constant 0 : i32
    return %c0_i32, %c0_i32_0 : i32, i32
  }
  func.func @transform_6(%arg0: i32) -> (i32, i32) {
    %c0_i32 = arith.constant 0 : i32
    %c0_i32_0 = arith.constant 0 : i32
    %c0_i32_1 = arith.constant 0 : i32
    return %c0_i32, %c0_i32_0 : i32, i32
  }
  func.func @transform_7(%arg0: i32) -> (i32, i32) {
    %c0_i32 = arith.constant 0 : i32
    %c0_i32_0 = arith.constant 0 : i32
    %c0_i32_1 = arith.constant 0 : i32
    return %c0_i32, %c0_i32_0 : i32, i32
  }
  func.func @transform_8(%arg0: i32) -> (i32, i32) {
    %c0_i32 = arith.constant 0 : i32
    %c0_i32_0 = arith.constant 0 : i32
    %c0_i32_1 = arith.constant 0 : i32
    return %c0_i32, %c0_i32_0 : i32, i32
  }
  func.func @transform_9(%arg0: i32) -> (i32, i32) {
    %c0_i32 = arith.constant 0 : i32
    %c0_i32_0 = arith.constant 0 : i32
    return %arg0, %c0_i32 : i32, i32
  }
}

</mosaic_0001>

<llo_original>
// kernel: tpu_custom_call.1
$region0: #{tpu_custom_call.1}
  #allocation0 [shape = 'u32[]', space=smem, size = 0x4, offset = 0x4, fixed_abs, tag = 'smem constant byte address 0x4 - core index']
  #allocation1 [shape = 'u32[144,128]{1,0:T(1,128)}', space=vmem, size = 0x12000, scoped, tag = 'internal scratch']
  %s0 = inlined_call_operand.vmem [shape: f32[32,128], index: 0, kind: input, shape index: {}]
  %s1 = inlined_call_operand.vmem [shape: f32[32,1], index: 1, kind: input, shape index: {}]
  %s2 = inlined_call_operand.vmem [shape: f32[32,1], index: 2, kind: input, shape index: {}]
  %s3 = inlined_call_operand.hbm [shape: f32[384,128], index: 3, kind: input, shape index: {}]
  %s4 = inlined_call_operand.vmem [shape: f32[1,128], index: 4, kind: input, shape index: {}]
  %s5 = inlined_call_operand.hbm [shape: f32[384,128], index: 5, kind: input, shape index: {}]
  %s6 = inlined_call_operand.vmem [shape: f32[1,128], index: 6, kind: input, shape index: {}]
  %s7 = inlined_call_operand.hbm [shape: f32[128,128], index: 7, kind: input, shape index: {}]
  %s8 = inlined_call_operand.vmem [shape: f32[1,128], index: 8, kind: input, shape index: {}]
  %s9 = inlined_call_operand.hbm [shape: f32[32,128], index: 9, kind: output, shape index: {}]
  %s10 = sld [smem:[#allocation0]]
  $region58: #{tpu_custom_call.1} parent=0
    _
  %s12 = ssub.s32 1, %s10
  %s13 = scalar_select 0, %s12, %s10
  $region1: #{tpu_custom_call.1} parent=0
    #allocation2 [shape = 'u8[196608]{0}', space=vmem, size = 0x30000, scoped, tag = 'input window, operand 3, single buffered']
    #allocation3 [shape = 's32[1]{0}', space=sflag, size = 0x4, scoped, tag = 'scoped memory for tpu_custom_call.1']
    #allocation4 [shape = 's32[1]{0}', space=sflag, size = 0x4, scoped, tag = 'scoped memory for tpu_custom_call.1']
    #allocation5 [shape = 'u8[196608]{0}', space=vmem, size = 0x30000, scoped, tag = 'input window, operand 5, single buffered']
    #allocation6 [shape = 's32[1]{0}', space=sflag, size = 0x4, scoped, tag = 'scoped memory for tpu_custom_call.1']
    #allocation7 [shape = 'u8[65536]{0}', space=vmem, size = 0x10000, scoped, tag = 'input window, operand 7, single buffered']
    #allocation8 [shape = 'u8[16384]{0}', space=vmem, size = 0x4000, scoped, tag = 'output window, operand 0, single buffered']
    %14 = vsyncpa [#allocation3], 0
    %15 = vsyncpa [#allocation6], 0
    %16 = vsyncpa [#allocation4], 0
    // Predicated region
    $region2: #{tpu_custom_call.1} parent=1 // pred_check
      _
    $region3: #{tpu_custom_call.1} parent=1 // pred_check_branch
      %18 = sbr.rel (0) target = $region5
    $region4: #{tpu_custom_call.1} parent=1 // pred_region
      _
    $region5: #{tpu_custom_call.1} parent=1 // pred_fallthru
      _
    // Predicated region
    $region6: #{tpu_custom_call.1} parent=1 // pred_check
      _
    $region7: #{tpu_custom_call.1} parent=1 // pred_check_branch
      %20 = sbr.rel (0) target = $region9
    $region8: #{tpu_custom_call.1} parent=1 // pred_region
      _
    $region9: #{tpu_custom_call.1} parent=1 // pred_fallthru
      _
    // Predicated region
    $region10: #{tpu_custom_call.1} parent=1 // pred_check
      _
    $region11: #{tpu_custom_call.1} parent=1 // pred_check_branch
      %22 = sbr.rel (0) target = $region13
    $region12: #{tpu_custom_call.1} parent=1 // pred_region
      _
    $region13: #{tpu_custom_call.1} parent=1 // pred_fallthru
      _
    // Predicated region
    $region14: #{tpu_custom_call.1} parent=1 // pred_check
      _
    $region15: #{tpu_custom_call.1} parent=1 // pred_check_branch
      %24 = sbr.rel (0) target = $region17
    $region16: #{tpu_custom_call.1} parent=1 // pred_region
      %s26 = ssub.s32 6144, 6144
      %27 = vsyncadd [#allocation3], %s26
      %s28 = sshll.u32 [#allocation2], 4
      %s29 = int_to_ptr.vmem [resolvable:$true] %s28
      %34 = dma.hbm_to_vmem [thread:$0]  %s3, 6144, %s29, [#allocation3], 128, 128, 8
    $region17: #{tpu_custom_call.1} parent=1 // pred_fallthru
      _
    // Predicated region
    $region18: #{tpu_custom_call.1} parent=1 // pred_check
      _
    $region19: #{tpu_custom_call.1} parent=1 // pred_check_branch
      %36 = sbr.rel (0) target = $region21
    $region20: #{tpu_custom_call.1} parent=1 // pred_region
      _
    $region21: #{tpu_custom_call.1} parent=1 // pred_fallthru
      _
    // Predicated region
    $region22: #{tpu_custom_call.1} parent=1 // pred_check
      _
    $region23: #{tpu_custom_call.1} parent=1 // pred_check_branch
      %38 = sbr.rel (0) target = $region25
    $region24: #{tpu_custom_call.1} parent=1 // pred_region
      %s40 = ssub.s32 6144, 6144
      %41 = vsyncadd [#allocation6], %s40
      %s42 = sshll.u32 [#allocation5], 4
      %s43 = int_to_ptr.vmem [resolvable:$true] %s42
      %48 = dma.hbm_to_vmem [thread:$0]  %s5, 6144, %s43, [#allocation6], 128, 128, 8
    $region25: #{tpu_custom_call.1} parent=1 // pred_fallthru
      _
    // Predicated region
    $region26: #{tpu_custom_call.1} parent=1 // pred_check
      _
    $region27: #{tpu_custom_call.1} parent=1 // pred_check_branch
      %50 = sbr.rel (0) target = $region29
    $region28: #{tpu_custom_call.1} parent=1 // pred_region
      _
    $region29: #{tpu_custom_call.1} parent=1 // pred_fallthru
      _
    // Predicated region
    $region30: #{tpu_custom_call.1} parent=1 // pred_check
      _
    $region31: #{tpu_custom_call.1} parent=1 // pred_check_branch
      %52 = sbr.rel (0) target = $region33
    $region32: #{tpu_custom_call.1} parent=1 // pred_region
      %s54 = ssub.s32 2048, 2048
      %55 = vsyncadd [#allocation6], %s54
      %s56 = sshll.u32 [#allocation7], 4
      %s57 = int_to_ptr.vmem [resolvable:$true] %s56
      %62 = dma.hbm_to_vmem [thread:$0]  %s7, 2048, %s57, [#allocation6], 128, 128, 8
    $region33: #{tpu_custom_call.1} parent=1 // pred_fallthru
      _
    // Predicated region
    $region34: #{tpu_custom_call.1} parent=1 // pred_check
      _
    $region35: #{tpu_custom_call.1} parent=1 // pred_check_branch
      %64 = sbr.rel (0) target = $region37
    $region36: #{tpu_custom_call.1} parent=1 // pred_region
      _
    $region37: #{tpu_custom_call.1} parent=1 // pred_fallthru
      _
    // Predicated region
    $region38: #{tpu_custom_call.1} parent=1 // pred_check
      _
    $region39: #{tpu_custom_call.1} parent=1 // pred_check_branch
      %66 = sbr.rel (0) target = $region41
    $region40: #{tpu_custom_call.1} parent=1 // pred_region
      %67 = dma.done [#allocation3], 6144
    $region41: #{tpu_custom_call.1} parent=1 // pred_fallthru
      _
    // Predicated region
    $region42: #{tpu_custom_call.1} parent=1 // pred_check
      _
    $region43: #{tpu_custom_call.1} parent=1 // pred_check_branch
      %69 = sbr.rel (0) target = $region45
    $region44: #{tpu_custom_call.1} parent=1 // pred_region
      %70 = dma.done [#allocation6], 6144
    $region45: #{tpu_custom_call.1} parent=1 // pred_fallthru
      _
    // Predicated region
    $region46: #{tpu_custom_call.1} parent=1 // pred_check
      _
    $region47: #{tpu_custom_call.1} parent=1 // pred_check_branch
      %72 = sbr.rel (0) target = $region49
    $region48: #{tpu_custom_call.1} parent=1 // pred_region
      %73 = dma.done [#allocation6], 2048
    $region49: #{tpu_custom_call.1} parent=1 // pred_fallthru
      _
    %v74 = vld [vmem:[%s0] sm:$0xff]
    %v75 = vld [vmem:[%s0 + $0x8] sm:$0xff]
    %v76 = vld [vmem:[%s0 + $0x10] sm:$0xff]
    %v77 = vld [vmem:[%s0 + $0x18] sm:$0xff]
    %v78 = vld [vmem:[%s1] sm:$0xff]
    %v79 = vld [vmem:[%s1 + $0x8] sm:$0xff]
    %v80 = vld [vmem:[%s1 + $0x10] sm:$0xff]
    %v81 = vld [vmem:[%s1 + $0x18] sm:$0xff]
    %v82 = vld [vmem:[%s2] sm:$0xff]
    %v83 = vld [vmem:[%s2 + $0x8] sm:$0xff]
    %v84 = vld [vmem:[%s2 + $0x10] sm:$0xff]
    %v85 = vld [vmem:[%s2 + $0x18] sm:$0xff]
    %vm90 = vcmask 1040384
    %v91 = vrot.slane %v74, 7
    %v92 = vrot.slane %v75, 7
    %v93 = vsel %vm90, %v91, %v92
    %v94 = vrot.slane %v76, 7
    %v95 = vsel %vm90, %v92, %v94
    %v96 = vrot.slane %v77, 7
    %v97 = vsel %vm90, %v94, %v96
    %v102 = vsel %vm90, 0.0, %v91
    %104 = vset.pattern.permute.xlu0 0
    %105 = vperm.xlu0 %104, %v78
    %v106 = vpop.permute.xlu0 %105
    %109 = vset.pattern.permute.xlu0 0
    %110 = vperm.xlu0 %109, %v79
    %v111 = vpop.permute.xlu0 %110
    %114 = vset.pattern.permute.xlu0 0
    %115 = vperm.xlu0 %114, %v80
    %v116 = vpop.permute.xlu0 %115
    %119 = vset.pattern.permute.xlu0 0
    %120 = vperm.xlu0 %119, %v81
    %v121 = vpop.permute.xlu0 %120
    %v123 = vmul.f32 %v102, %v106
    %v124 = vmul.f32 %v93, %v111
    %v125 = vmul.f32 %v95, %v116
    %v126 = vmul.f32 %v97, %v121
    %vm127 = vcmask 1046528
    %v128 = vrot.slane %v74, 1
    %v129 = vrot.slane %v75, 1
    %v130 = vsel %vm127, %v128, %v129
    %v131 = vrot.slane %v76, 1
    %v132 = vsel %vm127, %v129, %v131
    %v133 = vrot.slane %v77, 1
    %v134 = vsel %vm127, %v131, %v133
    %v139 = vsel %vm127, %v133, 0.0
    %141 = vset.pattern.permute.xlu0 0
    %142 = vperm.xlu0 %141, %v82
    %v143 = vpop.permute.xlu0 %142
    %146 = vset.pattern.permute.xlu0 0
    %147 = vperm.xlu0 %146, %v83
    %v148 = vpop.permute.xlu0 %147
    %151 = vset.pattern.permute.xlu0 0
    %152 = vperm.xlu0 %151, %v84
    %v153 = vpop.permute.xlu0 %152
    %156 = vset.pattern.permute.xlu0 0
    %157 = vperm.xlu0 %156, %v85
    %v158 = vpop.permute.xlu0 %157
    %v160 = vmul.f32 %v130, %v143
    %v161 = vmul.f32 %v132, %v148
    %v162 = vmul.f32 %v134, %v153
    %v163 = vmul.f32 %v139, %v158
    %v164 = vld [vmem:[#allocation2] sm:$0xff]
    %v165 = vld [vmem:[#allocation2 + $0x8] sm:$0xff]
    %v166 = vld [vmem:[#allocation2 + $0x10] sm:$0xff]
    %v167 = vld [vmem:[#allocation2 + $0x18] sm:$0xff]
    %v168 = vld [vmem:[#allocation2 + $0x20] sm:$0xff]
    %v169 = vld [vmem:[#allocation2 + $0x28] sm:$0xff]
    %v170 = vld [vmem:[#allocation2 + $0x30] sm:$0xff]
    %v171 = vld [vmem:[#allocation2 + $0x38] sm:$0xff]
    %v172 = vld [vmem:[#allocation2 + $0x40] sm:$0xff]
    %v173 = vld [vmem:[#allocation2 + $0x48] sm:$0xff]
    %v174 = vld [vmem:[#allocation2 + $0x50] sm:$0xff]
    %v175 = vld [vmem:[#allocation2 + $0x58] sm:$0xff]
    %v176 = vld [vmem:[#allocation2 + $0x60] sm:$0xff]
    %v177 = vld [vmem:[#allocation2 + $0x68] sm:$0xff]
    %v178 = vld [vmem:[#allocation2 + $0x70] sm:$0xff]
    %v179 = vld [vmem:[#allocation2 + $0x78] sm:$0xff]
    %v180 = vld [vmem:[#allocation2 + $0x80] sm:$0xff]
    %v181 = vld [vmem:[#allocation2 + $0x88] sm:$0xff]
    %v182 = vld [vmem:[#allocation2 + $0x90] sm:$0xff]
    %v183 = vld [vmem:[#allocation2 + $0x98] sm:$0xff]
    %v184 = vld [vmem:[#allocation2 + $0xa0] sm:$0xff]
    %v185 = vld [vmem:[#allocation2 + $0xa8] sm:$0xff]
    %v186 = vld [vmem:[#allocation2 + $0xb0] sm:$0xff]
    %v187 = vld [vmem:[#allocation2 + $0xb8] sm:$0xff]
    %v188 = vld [vmem:[#allocation2 + $0xc0] sm:$0xff]
    %v189 = vld [vmem:[#allocation2 + $0xc8] sm:$0xff]
    %v190 = vld [vmem:[#allocation2 + $0xd0] sm:$0xff]
    %v191 = vld [vmem:[#allocation2 + $0xd8] sm:$0xff]
    %v192 = vld [vmem:[#allocation2 + $0xe0] sm:$0xff]
    %v193 = vld [vmem:[#allocation2 + $0xe8] sm:$0xff]
    %v194 = vld [vmem:[#allocation2 + $0xf0] sm:$0xff]
    %v195 = vld [vmem:[#allocation2 + $0xf8] sm:$0xff]
    %v196 = vld [vmem:[#allocation2 + $0x100] sm:$0xff]
    %v197 = vld [vmem:[#allocation2 + $0x108] sm:$0xff]
    %v198 = vld [vmem:[#allocation2 + $0x110] sm:$0xff]
    %v199 = vld [vmem:[#allocation2 + $0x118] sm:$0xff]
    %v200 = vld [vmem:[#allocation2 + $0x120] sm:$0xff]
    %v201 = vld [vmem:[#allocation2 + $0x128] sm:$0xff]
    %v202 = vld [vmem:[#allocation2 + $0x130] sm:$0xff]
    %v203 = vld [vmem:[#allocation2 + $0x138] sm:$0xff]
    %v204 = vld [vmem:[#allocation2 + $0x140] sm:$0xff]
    %v205 = vld [vmem:[#allocation2 + $0x148] sm:$0xff]
    %v206 = vld [vmem:[#allocation2 + $0x150] sm:$0xff]
    %v207 = vld [vmem:[#allocation2 + $0x158] sm:$0xff]
    %v208 = vld [vmem:[#allocation2 + $0x160] sm:$0xff]
    %v209 = vld [vmem:[#allocation2 + $0x168] sm:$0xff]
    %v210 = vld [vmem:[#allocation2 + $0x170] sm:$0xff]
    %v211 = vld [vmem:[#allocation2 + $0x178] sm:$0xff]
    %v212 = vld [vmem:[%s4] sm:$0x1]
    %v214 = vlaneseq
    %v215 = vshrl.u32 %v214, 7
    %v216 = vsub.s32 0, %v215
    %v217 = vrot.slane %v212, %v216
    %219 = vmatprep.subr.mxu0 0.0
    %220 = vmatpush1.msra.mxu0 %v164
    %221 = vmatprep.subr.mxu0 0.0
    %222 = vmatpush1.msra.mxu0 %v165
    %223 = vmatprep.subr.mxu0 0.0
    %224 = vmatpush1.msra.mxu0 %v166
    %225 = vmatprep.subr.mxu0 0.0
    %226 = vmatpush1.msra.mxu0 %v167
    %227 = vmatprep.subr.mxu0 0.0
    %228 = vmatpush1.msra.mxu0 %v168
    %229 = vmatprep.subr.mxu0 0.0
    %230 = vmatpush1.msra.mxu0 %v169
    %231 = vmatprep.subr.mxu0 0.0
    %232 = vmatpush1.msra.mxu0 %v170
    %233 = vmatprep.subr.mxu0 0.0
    %234 = vmatpush1.msra.mxu0 %v171
    %235 = vmatprep.subr.mxu0 0.0
    %236 = vmatpush1.msra.mxu0 %v172
    %237 = vmatprep.subr.mxu0 0.0
    %238 = vmatpush1.msra.mxu0 %v173
    %239 = vmatprep.subr.mxu0 0.0
    %240 = vmatpush1.msra.mxu0 %v174
    %241 = vmatprep.subr.mxu0 0.0
    %242 = vmatpush1.msra.mxu0 %v175
    %243 = vmatprep.subr.mxu0 0.0
    %244 = vmatpush1.msra.mxu0 %v176
    %245 = vmatprep.subr.mxu0 0.0
    %246 = vmatpush1.msra.mxu0 %v177
    %247 = vmatprep.subr.mxu0 0.0
    %248 = vmatpush1.msra.mxu0 %v178
    %249 = vmatprep.subr.mxu0 0.0
    %250 = vmatpush1.msra.mxu0 %v179
    %251 = vmatprep.subr.mxu0 0.0
    %252 = vmatpush1.msra.mxu0 %v180
    %253 = vmatprep.subr.mxu0 0.0
    %254 = vmatpush1.msra.mxu0 %v181
    %255 = vmatprep.subr.mxu0 0.0
    %256 = vmatpush1.msra.mxu0 %v182
    %257 = vmatprep.subr.mxu0 0.0
    %258 = vmatpush1.msra.mxu0 %v183
    %259 = vmatprep.subr.mxu0 0.0
    %260 = vmatpush1.msra.mxu0 %v184
    %261 = vmatprep.subr.mxu0 0.0
    %262 = vmatpush1.msra.mxu0 %v185
    %263 = vmatprep.subr.mxu0 0.0
    %264 = vmatpush1.msra.mxu0 %v186
    %265 = vmatprep.subr.mxu0 0.0
    %266 = vmatpush1.msra.mxu0 %v187
    %267 = vmatprep.subr.mxu0 0.0
    %268 = vmatpush1.msra.mxu0 %v188
    %269 = vmatprep.subr.mxu0 0.0
    %270 = vmatpush1.msra.mxu0 %v189
    %271 = vmatprep.subr.mxu0 0.0
    %272 = vmatpush1.msra.mxu0 %v190
    %273 = vmatprep.subr.mxu0 0.0
    %274 = vmatpush1.msra.mxu0 %v191
    %275 = vmatprep.subr.mxu0 0.0
    %276 = vmatpush1.msra.mxu0 %v192
    %277 = vmatprep.subr.mxu0 0.0
    %278 = vmatpush1.msra.mxu0 %v193
    %279 = vmatprep.subr.mxu0 0.0
    %280 = vmatpush1.msra.mxu0 %v194
    %281 = vmatprep.subr.mxu0 0.0
    %282 = vmatpush1.msra.mxu0 %v195
    %283 = vmatprep.mubr.f32.mxu0 %v74
    %284 = vmatmul.mubr.f32.gmra.mrb[0].mxu0 %v123
    %v285 = vpop.f32.mrb[0].mxu0
    %v286 = vadd.f32 %v217, %v285
    %v287 = vpop.f32.mrb[0].mxu0
    %288 = vmatprep.mubr.f32.mxu0 %v75
    %289 = vmatmul.mubr.f32.gmra.mrb[0].mxu0 %v124
    %v290 = vpop.f32.mrb[0].mxu0
    %v291 = vadd.f32 %v217, %v290
    %v292 = vpop.f32.mrb[0].mxu0
    %293 = vmatprep.mubr.f32.mxu0 %v76
    %294 = vmatmul.mubr.f32.gmra.mrb[0].mxu0 %v125
    %v295 = vpop.f32.mrb[0].mxu0
    %v296 = vadd.f32 %v217, %v295
    %v297 = vpop.f32.mrb[0].mxu0
    %298 = vmatprep.mubr.f32.mxu0 %v77
    %299 = vmatmul.mubr.f32.gmra.mrb[0].mxu0 %v126
    %v300 = vpop.f32.mrb[0].mxu0
    %v301 = vadd.f32 %v217, %v300
    %v302 = vpop.f32.mrb[0].mxu0
    %303 = vdwg.mxu0
    %304 = vmatprep.subr.mxu0 0.0
    %305 = vmatpush1.msra.mxu0 %v196
    %306 = vmatprep.subr.mxu0 0.0
    %307 = vmatpush1.msra.mxu0 %v197
    %308 = vmatprep.subr.mxu0 0.0
    %309 = vmatpush1.msra.mxu0 %v198
    %310 = vmatprep.subr.mxu0 0.0
    %311 = vmatpush1.msra.mxu0 %v199
    %312 = vmatprep.subr.mxu0 0.0
    %313 = vmatpush1.msra.mxu0 %v200
    %314 = vmatprep.subr.mxu0 0.0
    %315 = vmatpush1.msra.mxu0 %v201
    %316 = vmatprep.subr.mxu0 0.0
    %317 = vmatpush1.msra.mxu0 %v202
    %318 = vmatprep.subr.mxu0 0.0
    %319 = vmatpush1.msra.mxu0 %v203
    %320 = vmatprep.subr.mxu0 0.0
    %321 = vmatpush1.msra.mxu0 %v204
    %322 = vmatprep.subr.mxu0 0.0
    %323 = vmatpush1.msra.mxu0 %v205
    %324 = vmatprep.subr.mxu0 0.0
    %325 = vmatpush1.msra.mxu0 %v206
    %326 = vmatprep.subr.mxu0 0.0
    %327 = vmatpush1.msra.mxu0 %v207
    %328 = vmatprep.subr.mxu0 0.0
    %329 = vmatpush1.msra.mxu0 %v208
    %330 = vmatprep.subr.mxu0 0.0
    %331 = vmatpush1.msra.mxu0 %v209
    %332 = vmatprep.subr.mxu0 0.0
    %333 = vmatpush1.msra.mxu0 %v210
    %334 = vmatprep.subr.mxu0 0.0
    %335 = vmatpush1.msra.mxu0 %v211
    %336 = vmatprep.subr.mxu0 0.0
    %337 = vmatpush1.msra.mxu0 0.0
    %338 = vmatprep.subr.mxu0 0.0
    %339 = vmatpush1.msra.mxu0 0.0
    %340 = vmatprep.subr.mxu0 0.0
    %341 = vmatpush1.msra.mxu0 0.0
    %342 = vmatprep.subr.mxu0 0.0
    %343 = vmatpush1.msra.mxu0 0.0
    %344 = vmatprep.subr.mxu0 0.0
    %345 = vmatpush1.msra.mxu0 0.0
    %346 = vmatprep.subr.mxu0 0.0
    %347 = vmatpush1.msra.mxu0 0.0
    %348 = vmatprep.subr.mxu0 0.0
    %349 = vmatpush1.msra.mxu0 0.0
    %350 = vmatprep.subr.mxu0 0.0
    %351 = vmatpush1.msra.mxu0 0.0
    %352 = vmatprep.subr.mxu0 0.0
    %353 = vmatpush1.msra.mxu0 0.0
    %354 = vmatprep.subr.mxu0 0.0
    %355 = vmatpush1.msra.mxu0 0.0
    %356 = vmatprep.subr.mxu0 0.0
    %357 = vmatpush1.msra.mxu0 0.0
    %358 = vmatprep.subr.mxu0 0.0
    %359 = vmatpush1.msra.mxu0 0.0
    %360 = vmatprep.subr.mxu0 0.0
    %361 = vmatpush1.msra.mxu0 0.0
    %362 = vmatprep.subr.mxu0 0.0
    %363 = vmatpush1.msra.mxu0 0.0
    %364 = vmatprep.subr.mxu0 0.0
    %365 = vmatpush1.msra.mxu0 0.0
    %366 = vmatprep.subr.mxu0 0.0
    %367 = vmatpush1.msra.mxu0 0.0
    %368 = vmatprep.mubr.f32.mxu0 0.0
    %369 = vmatmul.mubr.f32.gmra.mrb[0].mxu0 %v160
    %v370 = vpop.f32.mrb[0].mxu0
    %v371 = vadd.f32 %v286, %v370
    %v372 = vpop.f32.mrb[0].mxu0
    %373 = vmatprep.mubr.f32.mxu0 0.0
    %374 = vmatmul.mubr.f32.gmra.mrb[0].mxu0 %v161
    %v375 = vpop.f32.mrb[0].mxu0
    %v376 = vadd.f32 %v291, %v375
    %v377 = vpop.f32.mrb[0].mxu0
    %378 = vmatprep.mubr.f32.mxu0 0.0
    %379 = vmatmul.mubr.f32.gmra.mrb[0].mxu0 %v162
    %v380 = vpop.f32.mrb[0].mxu0
    %v381 = vadd.f32 %v296, %v380
    %v382 = vpop.f32.mrb[0].mxu0
    %383 = vmatprep.mubr.f32.mxu0 0.0
    %384 = vmatmul.mubr.f32.gmra.mrb[0].mxu0 %v163
    %v385 = vpop.f32.mrb[0].mxu0
    %v386 = vadd.f32 %v301, %v385
    %v387 = vpop.f32.mrb[0].mxu0
    %388 = vdwg.mxu0
    %v389 = vmul.f32 %v371, 0.01
    %v390 = vmul.f32 %v376, 0.01
    %v391 = vmul.f32 %v381, 0.01
    %v392 = vmul.f32 %v386, 0.01
    %v393 = vmax.f32 %v371, %v389
    %v394 = vmax.f32 %v376, %v390
    %v395 = vmax.f32 %v381, %v391
    %v396 = vmax.f32 %v386, %v392
    %v401 = vrot.slane %v393, 7
    %v402 = vrot.slane %v394, 7
    %v403 = vsel %vm90, %v401, %v402
    %v404 = vrot.slane %v395, 7
    %v405 = vsel %vm90, %v402, %v404
    %v406 = vrot.slane %v396, 7
    %v407 = vsel %vm90, %v404, %v406
    %v412 = vsel %vm90, 0.0, %v401
    %v413 = vmul.f32 %v412, %v106
    %v414 = vmul.f32 %v403, %v111
    %v415 = vmul.f32 %v405, %v116
    %v416 = vmul.f32 %v407, %v121
    %v417 = vrot.slane %v393, 1
    %v418 = vrot.slane %v394, 1
    %v419 = vsel %vm127, %v417, %v418
    %v420 = vrot.slane %v395, 1
    %v421 = vsel %vm127, %v418, %v420
    %v422 = vrot.slane %v396, 1
    %v423 = vsel %vm127, %v420, %v422
    %v428 = vsel %vm127, %v422, 0.0
    %v429 = vmul.f32 %v419, %v143
    %v430 = vmul.f32 %v421, %v148
    %v431 = vmul.f32 %v423, %v153
    %v432 = vmul.f32 %v428, %v158
    %v433 = vld [vmem:[#allocation5] sm:$0xff]
    %v434 = vld [vmem:[#allocation5 + $0x8] sm:$0xff]
    %v435 = vld [vmem:[#allocation5 + $0x10] sm:$0xff]
    %v436 = vld [vmem:[#allocation5 + $0x18] sm:$0xff]
    %v437 = vld [vmem:[#allocation5 + $0x20] sm:$0xff]
    %v438 = vld [vmem:[#allocation5 + $0x28] sm:$0xff]
    %v439 = vld [vmem:[#allocation5 + $0x30] sm:$0xff]
    %v440 = vld [vmem:[#allocation5 + $0x38] sm:$0xff]
    %v441 = vld [vmem:[#allocation5 + $0x40] sm:$0xff]
    %v442 = vld [vmem:[#allocation5 + $0x48] sm:$0xff]
    %v443 = vld [vmem:[#allocation5 + $0x50] sm:$0xff]
    %v444 = vld [vmem:[#allocation5 + $0x58] sm:$0xff]
    %v445 = vld [vmem:[#allocation5 + $0x60] sm:$0xff]
    %v446 = vld [vmem:[#allocation5 + $0x68] sm:$0xff]
    %v447 = vld [vmem:[#allocation5 + $0x70] sm:$0xff]
    %v448 = vld [vmem:[#allocation5 + $0x78] sm:$0xff]
    %v449 = vld [vmem:[#allocation5 + $0x80] sm:$0xff]
    %v450 = vld [vmem:[#allocation5 + $0x88] sm:$0xff]
    %v451 = vld [vmem:[#allocation5 + $0x90] sm:$0xff]
    %v452 = vld [vmem:[#allocation5 + $0x98] sm:$0xff]
    %v453 = vld [vmem:[#allocation5 + $0xa0] sm:$0xff]
    %v454 = vld [vmem:[#allocation5 + $0xa8] sm:$0xff]
    %v455 = vld [vmem:[#allocation5 + $0xb0] sm:$0xff]
    %v456 = vld [vmem:[#allocation5 + $0xb8] sm:$0xff]
    %v457 = vld [vmem:[#allocation5 + $0xc0] sm:$0xff]
    %v458 = vld [vmem:[#allocation5 + $0xc8] sm:$0xff]
    %v459 = vld [vmem:[#allocation5 + $0xd0] sm:$0xff]
    %v460 = vld [vmem:[#allocation5 + $0xd8] sm:$0xff]
    %v461 = vld [vmem:[#allocation5 + $0xe0] sm:$0xff]
    %v462 = vld [vmem:[#allocation5 + $0xe8] sm:$0xff]
    %v463 = vld [vmem:[#allocation5 + $0xf0] sm:$0xff]
    %v464 = vld [vmem:[#allocation5 + $0xf8] sm:$0xff]
    %v465 = vld [vmem:[#allocation5 + $0x100] sm:$0xff]
    %v466 = vld [vmem:[#allocation5 + $0x108] sm:$0xff]
    %v467 = vld [vmem:[#allocation5 + $0x110] sm:$0xff]
    %v468 = vld [vmem:[#allocation5 + $0x118] sm:$0xff]
    %v469 = vld [vmem:[#allocation5 + $0x120] sm:$0xff]
    %v470 = vld [vmem:[#allocation5 + $0x128] sm:$0xff]
    %v471 = vld [vmem:[#allocation5 + $0x130] sm:$0xff]
    %v472 = vld [vmem:[#allocation5 + $0x138] sm:$0xff]
    %v473 = vld [vmem:[#allocation5 + $0x140] sm:$0xff]
    %v474 = vld [vmem:[#allocation5 + $0x148] sm:$0xff]
    %v475 = vld [vmem:[#allocation5 + $0x150] sm:$0xff]
    %v476 = vld [vmem:[#allocation5 + $0x158] sm:$0xff]
    %v477 = vld [vmem:[#allocation5 + $0x160] sm:$0xff]
    %v478 = vld [vmem:[#allocation5 + $0x168] sm:$0xff]
    %v479 = vld [vmem:[#allocation5 + $0x170] sm:$0xff]
    %v480 = vld [vmem:[#allocation5 + $0x178] sm:$0xff]
    %v481 = vld [vmem:[%s6] sm:$0x1]
    %v483 = vlaneseq
    %v484 = vshrl.u32 %v483, 7
    %v485 = vsub.s32 0, %v484
    %v486 = vrot.slane %v481, %v485
    %488 = vmatprep.subr.mxu0 0.0
    %489 = vmatpush1.msra.mxu0 %v433
    %490 = vmatprep.subr.mxu0 0.0
    %491 = vmatpush1.msra.mxu0 %v434
    %492 = vmatprep.subr.mxu0 0.0
    %493 = vmatpush1.msra.mxu0 %v435
    %494 = vmatprep.subr.mxu0 0.0
    %495 = vmatpush1.msra.mxu0 %v436
    %496 = vmatprep.subr.mxu0 0.0
    %497 = vmatpush1.msra.mxu0 %v437
    %498 = vmatprep.subr.mxu0 0.0
    %499 = vmatpush1.msra.mxu0 %v438
    %500 = vmatprep.subr.mxu0 0.0
    %501 = vmatpush1.msra.mxu0 %v439
    %502 = vmatprep.subr.mxu0 0.0
    %503 = vmatpush1.msra.mxu0 %v440
    %504 = vmatprep.subr.mxu0 0.0
    %505 = vmatpush1.msra.mxu0 %v441
    %506 = vmatprep.subr.mxu0 0.0
    %507 = vmatpush1.msra.mxu0 %v442
    %508 = vmatprep.subr.mxu0 0.0
    %509 = vmatpush1.msra.mxu0 %v443
    %510 = vmatprep.subr.mxu0 0.0
    %511 = vmatpush1.msra.mxu0 %v444
    %512 = vmatprep.subr.mxu0 0.0
    %513 = vmatpush1.msra.mxu0 %v445
    %514 = vmatprep.subr.mxu0 0.0
    %515 = vmatpush1.msra.mxu0 %v446
    %516 = vmatprep.subr.mxu0 0.0
    %517 = vmatpush1.msra.mxu0 %v447
    %518 = vmatprep.subr.mxu0 0.0
    %519 = vmatpush1.msra.mxu0 %v448
    %520 = vmatprep.subr.mxu0 0.0
    %521 = vmatpush1.msra.mxu0 %v449
    %522 = vmatprep.subr.mxu0 0.0
    %523 = vmatpush1.msra.mxu0 %v450
    %524 = vmatprep.subr.mxu0 0.0
    %525 = vmatpush1.msra.mxu0 %v451
    %526 = vmatprep.subr.mxu0 0.0
    %527 = vmatpush1.msra.mxu0 %v452
    %528 = vmatprep.subr.mxu0 0.0
    %529 = vmatpush1.msra.mxu0 %v453
    %530 = vmatprep.subr.mxu0 0.0
    %531 = vmatpush1.msra.mxu0 %v454
    %532 = vmatprep.subr.mxu0 0.0
    %533 = vmatpush1.msra.mxu0 %v455
    %534 = vmatprep.subr.mxu0 0.0
    %535 = vmatpush1.msra.mxu0 %v456
    %536 = vmatprep.subr.mxu0 0.0
    %537 = vmatpush1.msra.mxu0 %v457
    %538 = vmatprep.subr.mxu0 0.0
    %539 = vmatpush1.msra.mxu0 %v458
    %540 = vmatprep.subr.mxu0 0.0
    %541 = vmatpush1.msra.mxu0 %v459
    %542 = vmatprep.subr.mxu0 0.0
    %543 = vmatpush1.msra.mxu0 %v460
    %544 = vmatprep.subr.mxu0 0.0
    %545 = vmatpush1.msra.mxu0 %v461
    %546 = vmatprep.subr.mxu0 0.0
    %547 = vmatpush1.msra.mxu0 %v462
    %548 = vmatprep.subr.mxu0 0.0
    %549 = vmatpush1.msra.mxu0 %v463
    %550 = vmatprep.subr.mxu0 0.0
    %551 = vmatpush1.msra.mxu0 %v464
    %552 = vmatprep.mubr.f32.mxu0 %v393
    %553 = vmatmul.mubr.f32.gmra.mrb[0].mxu0 %v413
    %v554 = vpop.f32.mrb[0].mxu0
    %v555 = vadd.f32 %v486, %v554
    %v556 = vpop.f32.mrb[0].mxu0
    %557 = vmatprep.mubr.f32.mxu0 %v394
    %558 = vmatmul.mubr.f32.gmra.mrb[0].mxu0 %v414
    %v559 = vpop.f32.mrb[0].mxu0
    %v560 = vadd.f32 %v486, %v559
    %v561 = vpop.f32.mrb[0].mxu0
    %562 = vmatprep.mubr.f32.mxu0 %v395
    %563 = vmatmul.mubr.f32.gmra.mrb[0].mxu0 %v415
    %v564 = vpop.f32.mrb[0].mxu0
    %v565 = vadd.f32 %v486, %v564
    %v566 = vpop.f32.mrb[0].mxu0
    %567 = vmatprep.mubr.f32.mxu0 %v396
    %568 = vmatmul.mubr.f32.gmra.mrb[0].mxu0 %v416
    %v569 = vpop.f32.mrb[0].mxu0
    %v570 = vadd.f32 %v486, %v569
    %v571 = vpop.f32.mrb[0].mxu0
    %572 = vdwg.mxu0
    %573 = vmatprep.subr.mxu0 0.0
    %574 = vmatpush1.msra.mxu0 %v465
    %575 = vmatprep.subr.mxu0 0.0
    %576 = vmatpush1.msra.mxu0 %v466
    %577 = vmatprep.subr.mxu0 0.0
    %578 = vmatpush1.msra.mxu0 %v467
    %579 = vmatprep.subr.mxu0 0.0
    %580 = vmatpush1.msra.mxu0 %v468
    %581 = vmatprep.subr.mxu0 0.0
    %582 = vmatpush1.msra.mxu0 %v469
    %583 = vmatprep.subr.mxu0 0.0
    %584 = vmatpush1.msra.mxu0 %v470
    %585 = vmatprep.subr.mxu0 0.0
    %586 = vmatpush1.msra.mxu0 %v471
    %587 = vmatprep.subr.mxu0 0.0
    %588 = vmatpush1.msra.mxu0 %v472
    %589 = vmatprep.subr.mxu0 0.0
    %590 = vmatpush1.msra.mxu0 %v473
    %591 = vmatprep.subr.mxu0 0.0
    %592 = vmatpush1.msra.mxu0 %v474
    %593 = vmatprep.subr.mxu0 0.0
    %594 = vmatpush1.msra.mxu0 %v475
    %595 = vmatprep.subr.mxu0 0.0
    %596 = vmatpush1.msra.mxu0 %v476
    %597 = vmatprep.subr.mxu0 0.0
    %598 = vmatpush1.msra.mxu0 %v477
    %599 = vmatprep.subr.mxu0 0.0
    %600 = vmatpush1.msra.mxu0 %v478
    %601 = vmatprep.subr.mxu0 0.0
    %602 = vmatpush1.msra.mxu0 %v479
    %603 = vmatprep.subr.mxu0 0.0
    %604 = vmatpush1.msra.mxu0 %v480
    %605 = vmatprep.subr.mxu0 0.0
    %606 = vmatpush1.msra.mxu0 0.0
    %607 = vmatprep.subr.mxu0 0.0
    %608 = vmatpush1.msra.mxu0 0.0
    %609 = vmatprep.subr.mxu0 0.0
    %610 = vmatpush1.msra.mxu0 0.0
    %611 = vmatprep.subr.mxu0 0.0
    %612 = vmatpush1.msra.mxu0 0.0
    %613 = vmatprep.subr.mxu0 0.0
    %614 = vmatpush1.msra.mxu0 0.0
    %615 = vmatprep.subr.mxu0 0.0
    %616 = vmatpush1.msra.mxu0 0.0
    %617 = vmatprep.subr.mxu0 0.0
    %618 = vmatpush1.msra.mxu0 0.0
    %619 = vmatprep.subr.mxu0 0.0
    %620 = vmatpush1.msra.mxu0 0.0
    %621 = vmatprep.subr.mxu0 0.0
    %622 = vmatpush1.msra.mxu0 0.0
    %623 = vmatprep.subr.mxu0 0.0
    %624 = vmatpush1.msra.mxu0 0.0
    %625 = vmatprep.subr.mxu0 0.0
    %626 = vmatpush1.msra.mxu0 0.0
    %627 = vmatprep.subr.mxu0 0.0
    %628 = vmatpush1.msra.mxu0 0.0
    %629 = vmatprep.subr.mxu0 0.0
    %630 = vmatpush1.msra.mxu0 0.0
    %631 = vmatprep.subr.mxu0 0.0
    %632 = vmatpush1.msra.mxu0 0.0
    %633 = vmatprep.subr.mxu0 0.0
    %634 = vmatpush1.msra.mxu0 0.0
    %635 = vmatprep.subr.mxu0 0.0
    %636 = vmatpush1.msra.mxu0 0.0
    %637 = vmatprep.mubr.f32.mxu0 0.0
    %638 = vmatmul.mubr.f32.gmra.mrb[0].mxu0 %v429
    %v639 = vpop.f32.mrb[0].mxu0
    %v640 = vadd.f32 %v555, %v639
    %v641 = vpop.f32.mrb[0].mxu0
    %642 = vmatprep.mubr.f32.mxu0 0.0
    %643 = vmatmul.mubr.f32.gmra.mrb[0].mxu0 %v430
    %v644 = vpop.f32.mrb[0].mxu0
    %v645 = vadd.f32 %v560, %v644
    %v646 = vpop.f32.mrb[0].mxu0
    %647 = vmatprep.mubr.f32.mxu0 0.0
    %648 = vmatmul.mubr.f32.gmra.mrb[0].mxu0 %v431
    %v649 = vpop.f32.mrb[0].mxu0
    %v650 = vadd.f32 %v565, %v649
    %v651 = vpop.f32.mrb[0].mxu0
    %652 = vmatprep.mubr.f32.mxu0 0.0
    %653 = vmatmul.mubr.f32.gmra.mrb[0].mxu0 %v432
    %v654 = vpop.f32.mrb[0].mxu0
    %v655 = vadd.f32 %v570, %v654
    %v656 = vpop.f32.mrb[0].mxu0
    %657 = vdwg.mxu0
    %v658 = vmul.f32 %v640, 0.01
    %v659 = vmul.f32 %v645, 0.01
    %v660 = vmul.f32 %v650, 0.01
    %v661 = vmul.f32 %v655, 0.01
    %v662 = vmax.f32 %v640, %v658
    %v663 = vmax.f32 %v645, %v659
    %v664 = vmax.f32 %v650, %v660
    %v665 = vmax.f32 %v655, %v661
    %v666 = vld [vmem:[#allocation7] sm:$0xff]
    %v667 = vld [vmem:[#allocation7 + $0x8] sm:$0xff]
    %v668 = vld [vmem:[#allocation7 + $0x10] sm:$0xff]
    %v669 = vld [vmem:[#allocation7 + $0x18] sm:$0xff]
    %v670 = vld [vmem:[#allocation7 + $0x20] sm:$0xff]
    %v671 = vld [vmem:[#allocation7 + $0x28] sm:$0xff]
    %v672 = vld [vmem:[#allocation7 + $0x30] sm:$0xff]
    %v673 = vld [vmem:[#allocation7 + $0x38] sm:$0xff]
    %v674 = vld [vmem:[#allocation7 + $0x40] sm:$0xff]
    %v675 = vld [vmem:[#allocation7 + $0x48] sm:$0xff]
    %v676 = vld [vmem:[#allocation7 + $0x50] sm:$0xff]
    %v677 = vld [vmem:[#allocation7 + $0x58] sm:$0xff]
    %v678 = vld [vmem:[#allocation7 + $0x60] sm:$0xff]
    %v679 = vld [vmem:[#allocation7 + $0x68] sm:$0xff]
    %v680 = vld [vmem:[#allocation7 + $0x70] sm:$0xff]
    %v681 = vld [vmem:[#allocation7 + $0x78] sm:$0xff]
    %v682 = vld [vmem:[%s8] sm:$0x1]
    %v684 = vlaneseq
    %v685 = vshrl.u32 %v684, 7
    %v686 = vsub.s32 0, %v685
    %v687 = vrot.slane %v682, %v686
    %689 = vmatprep.subr.mxu0 0.0
    %690 = vmatpush1.msra.mxu0 %v666
    %691 = vmatprep.subr.mxu0 0.0
    %692 = vmatpush1.msra.mxu0 %v667
    %693 = vmatprep.subr.mxu0 0.0
    %694 = vmatpush1.msra.mxu0 %v668
    %695 = vmatprep.subr.mxu0 0.0
    %696 = vmatpush1.msra.mxu0 %v669
    %697 = vmatprep.subr.mxu0 0.0
    %698 = vmatpush1.msra.mxu0 %v670
    %699 = vmatprep.subr.mxu0 0.0
    %700 = vmatpush1.msra.mxu0 %v671
    %701 = vmatprep.subr.mxu0 0.0
    %702 = vmatpush1.msra.mxu0 %v672
    %703 = vmatprep.subr.mxu0 0.0
    %704 = vmatpush1.msra.mxu0 %v673
    %705 = vmatprep.subr.mxu0 0.0
    %706 = vmatpush1.msra.mxu0 %v674
    %707 = vmatprep.subr.mxu0 0.0
    %708 = vmatpush1.msra.mxu0 %v675
    %709 = vmatprep.subr.mxu0 0.0
    %710 = vmatpush1.msra.mxu0 %v676
    %711 = vmatprep.subr.mxu0 0.0
    %712 = vmatpush1.msra.mxu0 %v677
    %713 = vmatprep.subr.mxu0 0.0
    %714 = vmatpush1.msra.mxu0 %v678
    %715 = vmatprep.subr.mxu0 0.0
    %716 = vmatpush1.msra.mxu0 %v679
    %717 = vmatprep.subr.mxu0 0.0
    %718 = vmatpush1.msra.mxu0 %v680
    %719 = vmatprep.subr.mxu0 0.0
    %720 = vmatpush1.msra.mxu0 %v681
    %721 = vmatprep.subr.mxu0 0.0
    %722 = vmatpush1.msra.mxu0 0.0
    %723 = vmatprep.subr.mxu0 0.0
    %724 = vmatpush1.msra.mxu0 0.0
    %725 = vmatprep.subr.mxu0 0.0
    %726 = vmatpush1.msra.mxu0 0.0
    %727 = vmatprep.subr.mxu0 0.0
    %728 = vmatpush1.msra.mxu0 0.0
    %729 = vmatprep.subr.mxu0 0.0
    %730 = vmatpush1.msra.mxu0 0.0
    %731 = vmatprep.subr.mxu0 0.0
    %732 = vmatpush1.msra.mxu0 0.0
    %733 = vmatprep.subr.mxu0 0.0
    %734 = vmatpush1.msra.mxu0 0.0
    %735 = vmatprep.subr.mxu0 0.0
    %736 = vmatpush1.msra.mxu0 0.0
    %737 = vmatprep.subr.mxu0 0.0
    %738 = vmatpush1.msra.mxu0 0.0
    %739 = vmatprep.subr.mxu0 0.0
    %740 = vmatpush1.msra.mxu0 0.0
    %741 = vmatprep.subr.mxu0 0.0
    %742 = vmatpush1.msra.mxu0 0.0
    %743 = vmatprep.subr.mxu0 0.0
    %744 = vmatpush1.msra.mxu0 0.0
    %745 = vmatprep.subr.mxu0 0.0
    %746 = vmatpush1.msra.mxu0 0.0
    %747 = vmatprep.subr.mxu0 0.0
    %748 = vmatpush1.msra.mxu0 0.0
    %749 = vmatprep.subr.mxu0 0.0
    %750 = vmatpush1.msra.mxu0 0.0
    %751 = vmatprep.subr.mxu0 0.0
    %752 = vmatpush1.msra.mxu0 0.0
    %753 = vmatprep.mubr.f32.mxu0 0.0
    %754 = vmatmul.mubr.f32.gmra.mrb[0].mxu0 %v74
    %v755 = vpop.f32.mrb[0].mxu0
    %v756 = vadd.f32 %v687, %v755
    %v757 = vpop.f32.mrb[0].mxu0
    %758 = vmatprep.mubr.f32.mxu0 0.0
    %759 = vmatmul.mubr.f32.gmra.mrb[0].mxu0 %v75
    %v760 = vpop.f32.mrb[0].mxu0
    %v761 = vadd.f32 %v687, %v760
    %v762 = vpop.f32.mrb[0].mxu0
    %763 = vmatprep.mubr.f32.mxu0 0.0
    %764 = vmatmul.mubr.f32.gmra.mrb[0].mxu0 %v76
    %v765 = vpop.f32.mrb[0].mxu0
    %v766 = vadd.f32 %v687, %v765
    %v767 = vpop.f32.mrb[0].mxu0
    %768 = vmatprep.mubr.f32.mxu0 0.0
    %769 = vmatmul.mubr.f32.gmra.mrb[0].mxu0 %v77
    %v770 = vpop.f32.mrb[0].mxu0
    %v771 = vadd.f32 %v687, %v770
    %v772 = vpop.f32.mrb[0].mxu0
    %773 = vdwg.mxu0
    %v774 = vadd.f32 %v662, %v756
    %v775 = vadd.f32 %v663, %v761
    %v776 = vadd.f32 %v664, %v766
    %v777 = vadd.f32 %v665, %v771
    %778 = vst [vmem:[#allocation8] sm:$0xff] %v774
    %779 = vst [vmem:[#allocation8 + $0x8] sm:$0xff] %v775
    %780 = vst [vmem:[#allocation8 + $0x10] sm:$0xff] %v776
    %781 = vst [vmem:[#allocation8 + $0x18] sm:$0xff] %v777
    // Predicated region
    $region50: #{tpu_custom_call.1} parent=1 // pred_check
      _
    $region51: #{tpu_custom_call.1} parent=1 // pred_check_branch
      %783 = sbr.rel (0) target = $region53
    $region52: #{tpu_custom_call.1} parent=1 // pred_region
      %s785 = ssub.s32 512, 512
      %786 = vsyncadd [#allocation4], %s785
      %s787 = sshll.u32 [#allocation8], 4
      %s788 = int_to_ptr.vmem [resolvable:$true] %s787
      %793 = dma.vmem_to_hbm [thread:$0]  %s788, 512, %s9, [#allocation4], 128, 128, 8
    $region53: #{tpu_custom_call.1} parent=1 // pred_fallthru
      _
    // Predicated region
    $region54: #{tpu_custom_call.1} parent=1 // pred_check
      _
    $region55: #{tpu_custom_call.1} parent=1 // pred_check_branch
      %795 = sbr.rel (0) target = $region57
    $region56: #{tpu_custom_call.1} parent=1 // pred_region
      %796 = dma.done [#allocation4], 512
    $region57: #{tpu_custom_call.1} parent=1 // pred_fallthru
      _
    %797 = vsyncpa [#allocation3], 1
    %798 = vsyncpa [#allocation6], 1
    %799 = vsyncpa [#allocation4], 1

</llo_original>
